<compile_context>
chip_gen: v6e
topology: v6e:2x2x1
jax: 0.10.0
libtpu: 0.0.40
codegen_flags: <defaults>
</compile_context>

<pallas_src>
import functools

import jax
import jax.numpy as jnp
from jax.experimental import pallas as pl
from jax.experimental.pallas import tpu as pltpu


def _round_up(x, m):
    return ((x + m - 1) // m) * m


def mlp_kernel(x_ref, w1_ref, w2_ref, w3_ref, o_ref, h1_ref, h2_ref,
               *, compute_dtype):
    # Cast the input tile to the MXU input dtype inside the kernel (the DMA
    # moves native-dtype x; no wrapper-side bf16 copy of x in HBM).
    x = x_ref[...].astype(compute_dtype)

    # Layer 1: Linear(in_dim -> 32, bias=False) + ReLU; f32 accumulate + ReLU.
    h1 = jnp.dot(x, w1_ref[...], preferred_element_type=jnp.float32)
    h1_ref[...] = jnp.maximum(h1, 0.0)

    # Layer 2: Linear(32 -> 32, bias=False) + ReLU.  Intermediates stay f32 in
    # VMEM scratch; cast to bf16 only at the dot input.
    h2 = jnp.dot(h1_ref[...].astype(compute_dtype), w2_ref[...],
                 preferred_element_type=jnp.float32)
    h2_ref[...] = jnp.maximum(h2, 0.0)

    # Layer 3: Linear(32 -> out_dim, bias=False).  Narrow (tile_b, out_dim)
    # store — out_dim equals the full array dim, so the block is legal and the
    # writeback DMA only moves useful bytes.
    out = jnp.dot(h2_ref[...].astype(compute_dtype), w3_ref[...],
                  preferred_element_type=jnp.float32)
    o_ref[...] = out.astype(o_ref.dtype)


def mlp_forward(x, w1, w2, w3, *, tile_b=4096, compute_dtype=jnp.bfloat16):
    """x: (B, D_in); w1: (D_in, H1); w2: (H1, H2); w3: (H2, D_out)."""
    B, D_in = x.shape
    H1 = w1.shape[1]
    H2 = w2.shape[1]
    D_out = w3.shape[1]

    sub = 8  # sublane alignment for the batch-tiled blocks (f32-safe)

    # Cap the tile so the grid keeps >= 2 blocks when B is large enough (lets
    # both v7x TensorCores work under dimension_semantics=("parallel",)),
    # then clamp to the rounded-up batch for small B.
    if B > 2 * sub:
        tile_b = min(tile_b, _round_up(pl.cdiv(B, 2), sub))
    tile_b = max(sub, min(_round_up(tile_b, sub), _round_up(B, sub)))

    grid = (pl.cdiv(B, tile_b),)

    # Weights are tiny (< 10 KiB total): cast once in the wrapper; constant
    # block indices keep them VMEM-resident across all grid steps.
    w1c = w1.astype(compute_dtype)
    w2c = w2.astype(compute_dtype)
    w3c = w3.astype(compute_dtype)

    out_dtype = x.dtype
    isz = lambda a: jnp.dtype(a.dtype).itemsize
    cost = pl.CostEstimate(
        flops=2 * B * (D_in * H1 + H1 * H2 + H2 * D_out),
        transcendentals=0,
        bytes_accessed=(x.size * isz(x)
                        + w1c.size * isz(w1c)
                        + w2c.size * isz(w2c)
                        + w3c.size * isz(w3c)
                        + B * D_out * jnp.dtype(out_dtype).itemsize),
    )

    kernel = functools.partial(mlp_kernel, compute_dtype=compute_dtype)

    return pl.pallas_call(
        kernel,
        out_shape=jax.ShapeDtypeStruct((B, D_out), out_dtype),
        grid=grid,
        in_specs=[
            # x: tiled over batch, double-buffered by the Pallas pipeline.
            pl.BlockSpec((tile_b, D_in), lambda i: (i, 0)),
            # Weights: constant block index -> fetched once, VMEM-resident.
            pl.BlockSpec((D_in, H1), lambda i: (0, 0)),
            pl.BlockSpec((H1, H2), lambda i: (0, 0)),
            pl.BlockSpec((H2, D_out), lambda i: (0, 0)),
        ],
        # Final shape/dtype emitted directly: no padded columns, no post-slice.
        out_specs=pl.BlockSpec((tile_b, D_out), lambda i: (i, 0)),
        scratch_shapes=[
            pltpu.VMEM((tile_b, H1), jnp.float32),
            pltpu.VMEM((tile_b, H2), jnp.float32),
        ],
        compiler_params=pltpu.CompilerParams(
            dimension_semantics=("parallel",),  # batch tiles shard on v7x's 2 TCs
        ),
        cost_estimate=cost,
    )(x, w1c, w2c, w3c)


def init_linear_weight(key, in_features, out_features, dtype=jnp.float32):
    """Deterministic init mimicking nn.Linear default (uniform +/- 1/sqrt(fan_in)).

    Returned weight is already transposed to (in_features, out_features).
    """
    bound = 1.0 / jnp.sqrt(jnp.array(in_features, dtype))
    w_torch_layout = jax.random.uniform(
        key, (out_features, in_features), dtype, minval=-bound, maxval=bound)
    return w_torch_layout.T  # (in_features, out_features)


if __name__ == "__main__":
    # Small shapes consistent with the module: in_dim=16, hidden=32, out_dim=8.
    batch, in_dim, hidden, out_dim = 8, 16, 32, 8

    key = jax.random.PRNGKey(0)
    kx, k1, k2, k3 = jax.random.split(key, 4)

    x = jax.random.normal(kx, (batch, in_dim), jnp.float32)
    w1 = init_linear_weight(k1, in_dim, hidden)    # (16, 32)
    w2 = init_linear_weight(k2, hidden, hidden)    # (32, 32)
    w3 = init_linear_weight(k3, hidden, out_dim)   # (32, 8)

    out = mlp_forward(x, w1, w2, w3)
    out = jax.block_until_ready(out)

    # Pure-JAX reference using the same math as the kernel: bf16 dot inputs,
    # f32 accumulation, f32 intermediates/ReLU.
    cd = jnp.bfloat16
    h = jnp.maximum(
        jnp.dot(x.astype(cd), w1.astype(cd), preferred_element_type=jnp.float32), 0.0)
    h = jnp.maximum(
        jnp.dot(h.astype(cd), w2.astype(cd), preferred_element_type=jnp.float32), 0.0)
    ref = jnp.dot(h.astype(cd), w3.astype(cd), preferred_element_type=jnp.float32)

    assert out.shape == (batch, out_dim)
    assert out.dtype == x.dtype
    assert jnp.allclose(out, ref, atol=1e-3, rtol=1e-3), float(
        jnp.max(jnp.abs(out - ref)))

    print("KERNEL_OK")
</pallas_src>

<mosaic_0001>
module attributes {stable_mosaic.version = 11 : i64} {
  func.func @mlp_kernel(%arg0: i32, %arg1: memref<8x16xf32, #tpu.memory_space<vmem>>, %arg2: memref<16x32xbf16, #tpu.memory_space<vmem>>, %arg3: memref<32x32xbf16, #tpu.memory_space<vmem>>, %arg4: memref<32x8xbf16, #tpu.memory_space<vmem>>, %arg5: memref<8x8xf32, #tpu.memory_space<vmem>>, %arg6: memref<8x32xf32, #tpu.memory_space<vmem>>, %arg7: memref<8x32xf32, #tpu.memory_space<vmem>>) attributes {dimension_semantics = [#tpu.dimension_semantics<parallel>], iteration_bounds = array<i64: 1>, scalar_prefetch = 0 : i64, scratch_operands = 2 : i64, tpu.core_type = #tpu.core_type<tc>, window_params = [{transform_indices = @transform_0, window_bounds = array<i64: 8, 16>}, {pipeline_mode = #tpu.pipeline_mode<synchronous>, transform_indices = @transform_1, window_bounds = array<i64: 16, 32>}, {pipeline_mode = #tpu.pipeline_mode<synchronous>, transform_indices = @transform_2, window_bounds = array<i64: 32, 32>}, {pipeline_mode = #tpu.pipeline_mode<synchronous>, transform_indices = @transform_3, window_bounds = array<i64: 32, 8>}, {transform_indices = @transform_4, window_bounds = array<i64: 8, 8>}]} {
    %c0 = arith.constant 0 : index
    %c0_0 = arith.constant 0 : index
    %0 = vector.load %arg1[%c0, %c0_0] : memref<8x16xf32, #tpu.memory_space<vmem>>, vector<8x16xf32>
    %1 = arith.truncf %0 : vector<8x16xf32> to vector<8x16xbf16>
    %c0_1 = arith.constant 0 : index
    %c0_2 = arith.constant 0 : index
    %2 = vector.load %arg2[%c0_1, %c0_2] : memref<16x32xbf16, #tpu.memory_space<vmem>>, vector<16x32xbf16>
    %cst = arith.constant dense<0.000000e+00> : vector<8x32xf32>
    %3 = tpu.matmul %1, %2, %cst {dimension_numbers = #tpu.dot_dimension_numbers<[1], [0], [0], [1], [0, 0, 1, 1], [], []>} : vector<8x16xbf16>, vector<16x32xbf16>, vector<8x32xf32> -> vector<8x32xf32>
    %cst_3 = arith.constant 0.000000e+00 : f32
    %4 = vector.broadcast %cst_3 : f32 to vector<8x32xf32>
    %5 = arith.maximumf %3, %4 : vector<8x32xf32>
    %c0_4 = arith.constant 0 : index
    %c0_5 = arith.constant 0 : index
    %6 = vector.load %arg6[%c0_4, %c0_5] : memref<8x32xf32, #tpu.memory_space<vmem>>, vector<8x32xf32>
    tpu.vector_store %arg6[%c0_4, %c0_5], %5 {strides = array<i32>} : memref<8x32xf32, #tpu.memory_space<vmem>>, vector<8x32xf32>,
    %c0_6 = arith.constant 0 : index
    %c0_7 = arith.constant 0 : index
    %7 = vector.load %arg6[%c0_6, %c0_7] : memref<8x32xf32, #tpu.memory_space<vmem>>, vector<8x32xf32>
    %8 = arith.truncf %7 : vector<8x32xf32> to vector<8x32xbf16>
    %c0_8 = arith.constant 0 : index
    %c0_9 = arith.constant 0 : index
    %9 = vector.load %arg3[%c0_8, %c0_9] : memref<32x32xbf16, #tpu.memory_space<vmem>>, vector<32x32xbf16>
    %cst_10 = arith.constant dense<0.000000e+00> : vector<8x32xf32>
    %10 = tpu.matmul %8, %9, %cst_10 {dimension_numbers = #tpu.dot_dimension_numbers<[1], [0], [0], [1], [0, 0, 1, 1], [], []>} : vector<8x32xbf16>, vector<32x32xbf16>, vector<8x32xf32> -> vector<8x32xf32>
    %cst_11 = arith.constant 0.000000e+00 : f32
    %11 = vector.broadcast %cst_11 : f32 to vector<8x32xf32>
    %12 = arith.maximumf %10, %11 : vector<8x32xf32>
    %c0_12 = arith.constant 0 : index
    %c0_13 = arith.constant 0 : index
    %13 = vector.load %arg7[%c0_12, %c0_13] : memref<8x32xf32, #tpu.memory_space<vmem>>, vector<8x32xf32>
    tpu.vector_store %arg7[%c0_12, %c0_13], %12 {strides = array<i32>} : memref<8x32xf32, #tpu.memory_space<vmem>>, vector<8x32xf32>,
    %c0_14 = arith.constant 0 : index
    %c0_15 = arith.constant 0 : index
    %14 = vector.load %arg7[%c0_14, %c0_15] : memref<8x32xf32, #tpu.memory_space<vmem>>, vector<8x32xf32>
    %15 = arith.truncf %14 : vector<8x32xf32> to vector<8x32xbf16>
    %c0_16 = arith.constant 0 : index
    %c0_17 = arith.constant 0 : index
    %16 = vector.load %arg4[%c0_16, %c0_17] : memref<32x8xbf16, #tpu.memory_space<vmem>>, vector<32x8xbf16>
    %cst_18 = arith.constant dense<0.000000e+00> : vector<8x8xf32>
    %17 = tpu.matmul %15, %16, %cst_18 {dimension_numbers = #tpu.dot_dimension_numbers<[1], [0], [0], [1], [0, 0, 1, 1], [], []>} : vector<8x32xbf16>, vector<32x8xbf16>, vector<8x8xf32> -> vector<8x8xf32>
    %c0_19 = arith.constant 0 : index
    %c0_20 = arith.constant 0 : index
    %18 = vector.load %arg5[%c0_19, %c0_20] : memref<8x8xf32, #tpu.memory_space<vmem>>, vector<8x8xf32>
    tpu.vector_store %arg5[%c0_19, %c0_20], %17 {strides = array<i32>} : memref<8x8xf32, #tpu.memory_space<vmem>>, vector<8x8xf32>,
    return
  }
  func.func @transform_0(%arg0: i32) -> (i32, i32) {
    %c0_i32 = arith.constant 0 : i32
    %c0_i32_0 = arith.constant 0 : i32
    return %arg0, %c0_i32 : i32, i32
  }
  func.func @transform_1(%arg0: i32) -> (i32, i32) {
    %c0_i32 = arith.constant 0 : i32
    %c0_i32_0 = arith.constant 0 : i32
    %c0_i32_1 = arith.constant 0 : i32
    return %c0_i32, %c0_i32_0 : i32, i32
  }
  func.func @transform_2(%arg0: i32) -> (i32, i32) {
    %c0_i32 = arith.constant 0 : i32
    %c0_i32_0 = arith.constant 0 : i32
    %c0_i32_1 = arith.constant 0 : i32
    return %c0_i32, %c0_i32_0 : i32, i32
  }
  func.func @transform_3(%arg0: i32) -> (i32, i32) {
    %c0_i32 = arith.constant 0 : i32
    %c0_i32_0 = arith.constant 0 : i32
    %c0_i32_1 = arith.constant 0 : i32
    return %c0_i32, %c0_i32_0 : i32, i32
  }
  func.func @transform_4(%arg0: i32) -> (i32, i32) {
    %c0_i32 = arith.constant 0 : i32
    %c0_i32_0 = arith.constant 0 : i32
    return %arg0, %c0_i32 : i32, i32
  }
}

</mosaic_0001>

<llo_original>
// kernel: tpu_custom_call.1
$region0: #{tpu_custom_call.1}
  #allocation0 [shape = 'u32[]', space=smem, size = 0x4, offset = 0x4, fixed_abs, tag = 'smem constant byte address 0x4 - core index']
  #allocation1 [shape = 'u32[144,128]{1,0:T(1,128)}', space=vmem, size = 0x12000, scoped, tag = 'internal scratch']
  #allocation2 [shape = 'f32[8,32]{1,0:T(8,128)}', space=vmem, size = 0x1000, scoped, tag = 'scratch operand']
  #allocation3 [shape = 'f32[8,32]{1,0:T(8,128)}', space=vmem, size = 0x1000, scoped, tag = 'scratch operand']
  %s0 = inlined_call_operand.hbm [shape: f32[8,16], index: 0, kind: input, shape index: {}]
  %s1 = inlined_call_operand.hbm [shape: bf16[16,32], index: 1, kind: input, shape index: {}]
  %s2 = inlined_call_operand.vmem [shape: bf16[32,32], index: 2, kind: input, shape index: {}]
  %s3 = inlined_call_operand.vmem [shape: bf16[32,8], index: 3, kind: input, shape index: {}]
  %s4 = inlined_call_operand.hbm [shape: f32[8,8], index: 4, kind: output, shape index: {}]
  %s5 = sld [smem:[#allocation0]]
  $region34: #{tpu_custom_call.1} parent=0
    _
  %s7 = ssub.s32 1, %s5
  %s8 = scalar_select 0, %s7, %s5
  $region1: #{tpu_custom_call.1} parent=0
    #allocation4 [shape = 'u8[4096]{0}', space=vmem, size = 0x1000, scoped, tag = 'input window, operand 0, single buffered']
    #allocation5 [shape = 's32[1]{0}', space=sflag, size = 0x4, scoped, tag = 'scoped memory for tpu_custom_call.1']
    #allocation6 [shape = 's32[1]{0}', space=sflag, size = 0x4, scoped, tag = 'scoped memory for tpu_custom_call.1']
    #allocation7 [shape = 'u8[4096]{0}', space=vmem, size = 0x1000, scoped, tag = 'input window, operand 1, single buffered']
    #allocation8 [shape = 's32[1]{0}', space=sflag, size = 0x4, scoped, tag = 'scoped memory for tpu_custom_call.1']
    #allocation9 [shape = 'u8[4096]{0}', space=vmem, size = 0x1000, scoped, tag = 'output window, operand 0, single buffered']
    %9 = vsyncpa [#allocation5], 0
    %10 = vsyncpa [#allocation8], 0
    %11 = vsyncpa [#allocation6], 0
    // Predicated region
    $region2: #{tpu_custom_call.1} parent=1 // pred_check
      _
    $region3: #{tpu_custom_call.1} parent=1 // pred_check_branch
      %13 = sbr.rel (0) target = $region5
    $region4: #{tpu_custom_call.1} parent=1 // pred_region
      %s15 = ssub.s32 128, 128
      %16 = vsyncadd [#allocation5], %s15
      %s18 = sshll.u32 [#allocation4], 4
      %s19 = int_to_ptr.vmem [resolvable:$true] %s18
      %21 = dma.hbm_to_vmem [thread:$0]  %s0, 128, %s19, [#allocation5]
    $region5: #{tpu_custom_call.1} parent=1 // pred_fallthru
      _
    // Predicated region
    $region6: #{tpu_custom_call.1} parent=1 // pred_check
      _
    $region7: #{tpu_custom_call.1} parent=1 // pred_check_branch
      %23 = sbr.rel (0) target = $region9
    $region8: #{tpu_custom_call.1} parent=1 // pred_region
      %s25 = ssub.s32 128, 128
      %26 = vsyncadd [#allocation8], %s25
      %s27 = sshll.u32 [#allocation7], 4
      %s28 = int_to_ptr.vmem [resolvable:$true] %s27
      %33 = dma.hbm_to_vmem [thread:$0]  %s1, 128, %s28, [#allocation8], 64, 64, 4
    $region9: #{tpu_custom_call.1} parent=1 // pred_fallthru
      _
    // Predicated region
    $region10: #{tpu_custom_call.1} parent=1 // pred_check
      _
    $region11: #{tpu_custom_call.1} parent=1 // pred_check_branch
      %35 = sbr.rel (0) target = $region13
    $region12: #{tpu_custom_call.1} parent=1 // pred_region
      _
    $region13: #{tpu_custom_call.1} parent=1 // pred_fallthru
      _
    // Predicated region
    $region14: #{tpu_custom_call.1} parent=1 // pred_check
      _
    $region15: #{tpu_custom_call.1} parent=1 // pred_check_branch
      %37 = sbr.rel (0) target = $region17
    $region16: #{tpu_custom_call.1} parent=1 // pred_region
      _
    $region17: #{tpu_custom_call.1} parent=1 // pred_fallthru
      _
    // Predicated region
    $region18: #{tpu_custom_call.1} parent=1 // pred_check
      _
    $region19: #{tpu_custom_call.1} parent=1 // pred_check_branch
      %39 = sbr.rel (0) target = $region21
    $region20: #{tpu_custom_call.1} parent=1 // pred_region
      %40 = dma.done [#allocation5], 128
    $region21: #{tpu_custom_call.1} parent=1 // pred_fallthru
      _
    // Predicated region
    $region22: #{tpu_custom_call.1} parent=1 // pred_check
      _
    $region23: #{tpu_custom_call.1} parent=1 // pred_check_branch
      %42 = sbr.rel (0) target = $region25
    $region24: #{tpu_custom_call.1} parent=1 // pred_region
      %43 = dma.done [#allocation8], 128
    $region25: #{tpu_custom_call.1} parent=1 // pred_fallthru
      _
    %v45 = vld [vmem:[#allocation4] sm:$0xff]
    %v46 = vpack.c.bf16 %v45, %v45
    %v47 = vld [vmem:[#allocation7] sm:$0xf]
    %v48 = vld [vmem:[#allocation7 + $0x4] sm:$0xf]
    %v51 = vunpack.c.l.b16 %v47
    %v52 = vunpack.c.l.b16 %v48
    %v53 = vpack.c.b16 %v52, %v51
    %vm55 = vcmask 130048
    %v57 = vsel %vm55, %v46, 0
    %59 = vmatprep.subr.bf16.mxu0 0
    %60 = vmatpush1.bf16.msra.mxu0 0
    %61 = vmatprep.subr.bf16.mxu0 0
    %62 = vmatpush1.bf16.msra.mxu0 0
    %63 = vmatprep.subr.bf16.mxu0 0
    %64 = vmatpush1.bf16.msra.mxu0 0
    %65 = vmatprep.subr.bf16.mxu0 0
    %66 = vmatpush1.bf16.msra.mxu0 0
    %67 = vmatprep.subr.bf16.mxu0 0
    %68 = vmatpush1.bf16.msra.mxu0 0
    %69 = vmatprep.subr.bf16.mxu0 0
    %70 = vmatpush1.bf16.msra.mxu0 0
    %71 = vmatprep.subr.bf16.mxu0 0
    %72 = vmatpush1.bf16.msra.mxu0 0
    %73 = vmatprep.subr.bf16.mxu0 0
    %74 = vmatpush1.bf16.msra.mxu0 %v53
    %75 = vmatprep.subr.bf16.mxu0 0
    %76 = vmatpush2.bf16.msra.mxu0 0
    %77 = vmatprep.subr.bf16.mxu0 0
    %78 = vmatpush2.bf16.msra.mxu0 0
    %79 = vmatprep.subr.bf16.mxu0 0
    %80 = vmatpush2.bf16.msra.mxu0 0
    %81 = vmatprep.subr.bf16.mxu0 0
    %82 = vmatpush2.bf16.msra.mxu0 0
    %83 = vmatprep.subr.bf16.mxu0 0
    %84 = vmatpush2.bf16.msra.mxu0 0
    %85 = vmatprep.subr.bf16.mxu0 0
    %86 = vmatpush2.bf16.msra.mxu0 0
    %87 = vmatprep.subr.bf16.mxu0 0
    %88 = vmatpush2.bf16.msra.mxu0 0
    %89 = vmatprep.subr.bf16.mxu0 0
    %90 = vmatpush2.bf16.msra.mxu0 0
    %91 = vmatprep.mubr.bf16.mxu0 0
    %92 = vmatmul.mubr.bf16.gmra.mxu0 %v57
    %v93 = vpop.f32.mrf.mxu0
    %v94 = vadd.f32 0.0, %v93
    %v95 = vpop.f32.mrf.mxu0
    %v96 = vpop.f32.mrf.mxu0
    %v97 = vpop.f32.mrf.mxu0
    %98 = vdwg.mxu0
    %v99 = vmax.f32 %v94, 0.0
    %vm100 = vcmask 261120
    %101 = vst.msk [vmem:[#allocation2] sm:$0xff] %vm100, %v99
    %v102 = vld [vmem:[#allocation2] sm:$0xff]
    %v103 = vpack.c.bf16 %v102, %v102
    %v104 = vld [vmem:[%s2] sm:$0xf]
    %v105 = vld [vmem:[%s2 + $0x4] sm:$0xf]
    %v106 = vld [vmem:[%s2 + $0x8] sm:$0xf]
    %v107 = vld [vmem:[%s2 + $0xc] sm:$0xf]
    %v112 = vunpack.c.l.b16 %v104
    %v113 = vunpack.c.l.b16 %v105
    %v114 = vunpack.c.l.b16 %v106
    %v115 = vunpack.c.l.b16 %v107
    %v116 = vpack.c.b16 %v113, %v112
    %v117 = vpack.c.b16 %v115, %v114
    %v121 = vsel %vm100, %v103, 0
    %123 = vmatprep.subr.bf16.mxu0 0
    %124 = vmatpush1.bf16.msra.mxu0 0
    %125 = vmatprep.subr.bf16.mxu0 0
    %126 = vmatpush1.bf16.msra.mxu0 0
    %127 = vmatprep.subr.bf16.mxu0 0
    %128 = vmatpush1.bf16.msra.mxu0 0
    %129 = vmatprep.subr.bf16.mxu0 0
    %130 = vmatpush1.bf16.msra.mxu0 0
    %131 = vmatprep.subr.bf16.mxu0 0
    %132 = vmatpush1.bf16.msra.mxu0 0
    %133 = vmatprep.subr.bf16.mxu0 0
    %134 = vmatpush1.bf16.msra.mxu0 0
    %135 = vmatprep.subr.bf16.mxu0 0
    %136 = vmatpush1.bf16.msra.mxu0 %v117
    %137 = vmatprep.subr.bf16.mxu0 0
    %138 = vmatpush1.bf16.msra.mxu0 %v116
    %139 = vmatprep.subr.bf16.mxu0 0
    %140 = vmatpush2.bf16.msra.mxu0 0
    %141 = vmatprep.subr.bf16.mxu0 0
    %142 = vmatpush2.bf16.msra.mxu0 0
    %143 = vmatprep.subr.bf16.mxu0 0
    %144 = vmatpush2.bf16.msra.mxu0 0
    %145 = vmatprep.subr.bf16.mxu0 0
    %146 = vmatpush2.bf16.msra.mxu0 0
    %147 = vmatprep.subr.bf16.mxu0 0
    %148 = vmatpush2.bf16.msra.mxu0 0
    %149 = vmatprep.subr.bf16.mxu0 0
    %150 = vmatpush2.bf16.msra.mxu0 0
    %151 = vmatprep.subr.bf16.mxu0 0
    %152 = vmatpush2.bf16.msra.mxu0 0
    %153 = vmatprep.subr.bf16.mxu0 0
    %154 = vmatpush2.bf16.msra.mxu0 0
    %155 = vmatprep.mubr.bf16.mxu0 0
    %156 = vmatmul.mubr.bf16.gmra.mxu0 %v121
    %v157 = vpop.f32.mrf.mxu0
    %v158 = vadd.f32 0.0, %v157
    %v159 = vpop.f32.mrf.mxu0
    %v160 = vpop.f32.mrf.mxu0
    %v161 = vpop.f32.mrf.mxu0
    %162 = vdwg.mxu0
    %v163 = vmax.f32 %v158, 0.0
    %164 = vst.msk [vmem:[#allocation3] sm:$0xff] %vm100, %v163
    %v165 = vld [vmem:[#allocation3] sm:$0xff]
    %v166 = vpack.c.bf16 %v165, %v165
    %v167 = vld [vmem:[%s3] sm:$0xf]
    %v168 = vld [vmem:[%s3 + $0x4] sm:$0xf]
    %v169 = vld [vmem:[%s3 + $0x8] sm:$0xf]
    %v170 = vld [vmem:[%s3 + $0xc] sm:$0xf]
    %v175 = vunpack.c.l.b16 %v167
    %v176 = vunpack.c.l.b16 %v168
    %v177 = vunpack.c.l.b16 %v169
    %v178 = vunpack.c.l.b16 %v170
    %v179 = vpack.c.b16 %v176, %v175
    %v180 = vpack.c.b16 %v178, %v177
    %v184 = vsel %vm100, %v166, 0
    %186 = vmatprep.subr.bf16.mxu0 0
    %187 = vmatpush1.bf16.msra.mxu0 0
    %188 = vmatprep.subr.bf16.mxu0 0
    %189 = vmatpush1.bf16.msra.mxu0 0
    %190 = vmatprep.subr.bf16.mxu0 0
    %191 = vmatpush1.bf16.msra.mxu0 0
    %192 = vmatprep.subr.bf16.mxu0 0
    %193 = vmatpush1.bf16.msra.mxu0 0
    %194 = vmatprep.subr.bf16.mxu0 0
    %195 = vmatpush1.bf16.msra.mxu0 0
    %196 = vmatprep.subr.bf16.mxu0 0
    %197 = vmatpush1.bf16.msra.mxu0 0
    %198 = vmatprep.subr.bf16.mxu0 0
    %199 = vmatpush1.bf16.msra.mxu0 %v180
    %200 = vmatprep.subr.bf16.mxu0 0
    %201 = vmatpush1.bf16.msra.mxu0 %v179
    %202 = vmatprep.subr.bf16.mxu0 0
    %203 = vmatpush2.bf16.msra.mxu0 0
    %204 = vmatprep.subr.bf16.mxu0 0
    %205 = vmatpush2.bf16.msra.mxu0 0
    %206 = vmatprep.subr.bf16.mxu0 0
    %207 = vmatpush2.bf16.msra.mxu0 0
    %208 = vmatprep.subr.bf16.mxu0 0
    %209 = vmatpush2.bf16.msra.mxu0 0
    %210 = vmatprep.subr.bf16.mxu0 0
    %211 = vmatpush2.bf16.msra.mxu0 0
    %212 = vmatprep.subr.bf16.mxu0 0
    %213 = vmatpush2.bf16.msra.mxu0 0
    %214 = vmatprep.subr.bf16.mxu0 0
    %215 = vmatpush2.bf16.msra.mxu0 0
    %216 = vmatprep.subr.bf16.mxu0 0
    %217 = vmatpush2.bf16.msra.mxu0 0
    %218 = vmatprep.mubr.bf16.mxu0 0
    %219 = vmatmul.mubr.bf16.gmra.mxu0 %v184
    %v220 = vpop.f32.mrf.mxu0
    %v221 = vadd.f32 0.0, %v220
    %v222 = vpop.f32.mrf.mxu0
    %v223 = vpop.f32.mrf.mxu0
    %v224 = vpop.f32.mrf.mxu0
    %225 = vdwg.mxu0
    %vm226 = vcmask 64512
    %227 = vst.msk [vmem:[#allocation9] sm:$0xff] %vm226, %v221
    // Predicated region
    $region26: #{tpu_custom_call.1} parent=1 // pred_check
      _
    $region27: #{tpu_custom_call.1} parent=1 // pred_check_branch
      %229 = sbr.rel (0) target = $region29
    $region28: #{tpu_custom_call.1} parent=1 // pred_region
      %s231 = ssub.s32 128, 128
      %232 = vsyncadd [#allocation6], %s231
      %s234 = sshll.u32 [#allocation9], 4
      %s235 = int_to_ptr.vmem [resolvable:$true] %s234
      %237 = dma.vmem_to_hbm [thread:$0]  %s235, 128, %s4, [#allocation6]
    $region29: #{tpu_custom_call.1} parent=1 // pred_fallthru
      _
    // Predicated region
    $region30: #{tpu_custom_call.1} parent=1 // pred_check
      _
    $region31: #{tpu_custom_call.1} parent=1 // pred_check_branch
      %239 = sbr.rel (0) target = $region33
    $region32: #{tpu_custom_call.1} parent=1 // pred_region
      %240 = dma.done [#allocation6], 128
    $region33: #{tpu_custom_call.1} parent=1 // pred_fallthru
      _
    %241 = vsyncpa [#allocation5], 1
    %242 = vsyncpa [#allocation8], 1
    %243 = vsyncpa [#allocation6], 1

</llo_original>
